<compile_context>
chip_gen: v7x
topology: tpu7x:2x2x1
jax: 0.10.0
libtpu: 0.0.40
codegen_flags: <defaults>
</compile_context>

<pallas_src>
import functools

import jax
import jax.numpy as jnp
from jax.experimental import pallas as pl
from jax.experimental.pallas import tpu as pltpu

LANE = 128
HALO = 2  # row halo (each side) needed by the fused conv3x3 -> conv3x3 chain


def _round_up(x, m):
    return ((x + m - 1) // m) * m


def _largest_divisor_leq(n, cap):
    cap = max(1, min(n, cap))
    for d in range(cap, 0, -1):
        if n % d == 0:
            return d
    return 1


def _vmem_budget_bytes():
    """Generation-aware VMEM budget: ~56 MiB on v7x (64 MiB/TC), ~100 MiB on v5e/v6e."""
    cap = 64 * 1024 * 1024
    try:
        cap = int(pltpu.get_tpu_info().vmem_capacity_bytes)
    except Exception:
        pass
    return max(32 * 1024 * 1024, min(cap - cap // 8, 100 * 1024 * 1024))


# ----------------------------------------------------------------------------
# Kernel 1: ConvTranspose2d(k=2, s=2)  ==  per-pixel matmul against (Cin, 4*Cout)
# x and s are separate inputs (split-K); the single matmul's 4*Cout_p columns are
# ordered (dh, dw, cout) so the packed output reshapes to upsampled NHWC for free.
# ----------------------------------------------------------------------------
def _conv_transpose_kernel(x_ref, s_ref, wx_ref, ws_ref, b_ref, o_ref, *, TH, W, CO2):
    # x_ref : (1, TH*W, Cx_p) bf16 ; s_ref : (1, TH*W, Cs_p) bf16
    # wx/ws : (C*_p, 4*Cout_p) bf16, columns ordered (dh, dw, cout)
    # b_ref : (1, 4*Cout_p) f32
    # o_ref : (1, TH, 2, W, 2*Cout_p) bf16
    y = jnp.dot(x_ref[0], wx_ref[...], preferred_element_type=jnp.float32)
    y = y + jnp.dot(s_ref[0], ws_ref[...], preferred_element_type=jnp.float32)
    y = (y + b_ref[0]).astype(o_ref.dtype)
    o_ref[0, :, 0, :, :] = y[:, :CO2].reshape(TH, W, CO2)   # dh = 0 plane
    o_ref[0, :, 1, :, :] = y[:, CO2:].reshape(TH, W, CO2)   # dh = 1 plane


def conv_transpose_2x2(x, s, wx, ws, b4, cout_p, vmem_budget):
    """x:(N,H,W,Cx_p) s:(N,H,W,Cs_p) bf16 -> (N,2H,2W,Cout_p) bf16."""
    N, H, W, cx_p = x.shape
    _, _, _, cs_p = s.shape
    assert W % 8 == 0, "width must be a multiple of 8"  # TODO(synk): pad W otherwise
    co2 = 2 * cout_p

    def need(th):
        rows = th * W
        return (2 * rows * (cx_p + cs_p) * 2       # double-buffered inputs
                + 2 * rows * 2 * co2 * 2           # double-buffered output tile
                + rows * 2 * co2 * 4               # f32 accumulator value
                + 2 * (cx_p + cs_p) * 2 * co2 * 2)  # weights

    # ~4096 matmul rows per grid step, bounded by the per-generation VMEM budget.
    th = _largest_divisor_leq(H, max(1, 4096 // W))
    while th > 1 and need(th) > (vmem_budget * 6) // 10:
        th = _largest_divisor_leq(H, th - 1)

    x2 = x.reshape(N, H * W, cx_p)                  # free adjacent-dim merge
    s2 = s.reshape(N, H * W, cs_p)
    kernel = functools.partial(_conv_transpose_kernel, TH=th, W=W, CO2=co2)
    out = pl.pallas_call(
        kernel,
        out_shape=jax.ShapeDtypeStruct((N, H, 2, W, co2), jnp.bfloat16),
        grid=(N, H // th),
        in_specs=[
            pl.BlockSpec((1, th * W, cx_p), lambda n, t: (n, t, 0)),
            pl.BlockSpec((1, th * W, cs_p), lambda n, t: (n, t, 0)),
            pl.BlockSpec((cx_p, 2 * co2), lambda n, t: (0, 0)),
            pl.BlockSpec((cs_p, 2 * co2), lambda n, t: (0, 0)),
            pl.BlockSpec((1, 2 * co2), lambda n, t: (0, 0)),
        ],
        out_specs=pl.BlockSpec((1, th, 2, W, co2), lambda n, t: (n, t, 0, 0, 0)),
        compiler_params=pltpu.CompilerParams(
            dimension_semantics=("parallel", "parallel"),
            vmem_limit_bytes=vmem_budget),
    )(x2, s2, wx, ws, b4)
    # (N,H,2,W,2*Cout_p) -> (N,2H,2W,Cout_p): pure adjacent-dim merge => free reshape.
    return out.reshape(N, 2 * H, 2 * W, cout_p)


# ----------------------------------------------------------------------------
# Kernel 2: fused ResidualBlock  y = ReLU(conv3x3(ReLU(conv3x3(x)+b1)) + b2 + x)
# Activation stays in HBM (pl.ANY); a (TH+4)-row slab with halo is fetched per row
# tile via double-buffered manual DMA.  Each conv is 9 accumulating tap matmuls.
# ----------------------------------------------------------------------------
def _residual_block_kernel(x_hbm, w1_ref, b1_ref, w2_ref, b2_ref, o_ref,
                           slab, h_ref, sem, *, TH, H, W, Cp):
    n = pl.program_id(0)
    t = pl.program_id(1)
    T = pl.num_programs(1)
    slot = t % 2
    R1 = TH + 2                       # conv1 rows computed (1-row halo for conv2)

    def slab_copies(nn, tt, sl):
        r0 = tt * TH
        top = jnp.maximum(r0 - HALO, 0)          # clamped at edges; junk zeroed below
        bot = jnp.minimum(r0 + TH, H - HALO)
        return (
            pltpu.make_async_copy(x_hbm.at[nn, pl.ds(top, HALO)],
                                  slab.at[sl, pl.ds(0, HALO)], sem.at[sl, 0]),
            pltpu.make_async_copy(x_hbm.at[nn, pl.ds(r0, TH)],
                                  slab.at[sl, pl.ds(HALO, TH)], sem.at[sl, 1]),
            pltpu.make_async_copy(x_hbm.at[nn, pl.ds(bot, HALO)],
                                  slab.at[sl, pl.ds(HALO + TH, HALO)], sem.at[sl, 2]),
        )

    # Prologue: the first tile of each image fetches its own slab.
    @pl.when(t == 0)
    def _():
        for c in slab_copies(n, t, slot):
            c.start()

    for c in slab_copies(n, t, slot):
        c.wait()

    # Prefetch the next row tile of the same image into the other slot.
    @pl.when(t + 1 < T)
    def _():
        for c in slab_copies(n, t + 1, 1 - slot):
            c.start()

    sv = slab.at[slot]

    # Out-of-image halo rows act as conv zero padding (first / last tile only).
    @pl.when(t == 0)
    def _():
        sv[0:HALO, :, :] = jnp.zeros((HALO, W, Cp), jnp.bfloat16)

    @pl.when(t == T - 1)
    def _():
        sv[HALO + TH:HALO + TH + HALO, :, :] = jnp.zeros((HALO, W, Cp), jnp.bfloat16)

    def conv3x3(src_ref, rows, w_ref):
        """sum_{dh,dw} shifted_window(src) @ w[dh*3+dw]; column zero-pad via shifts."""
        zcol = jnp.zeros((rows, 1, Cp), jnp.bfloat16)
        acc = None
        for dh in range(3):
            a = src_ref[pl.ds(dh, rows), :, :]                      # (rows, W, Cp) bf16
            shifted = (jnp.concatenate([zcol, a[:, :W - 1, :]], axis=1),   # dw = 0
                       a,                                                  # dw = 1
                       jnp.concatenate([a[:, 1:, :], zcol], axis=1))       # dw = 2
            for dw in range(3):
                lhs = shifted[dw].reshape(rows * W, Cp)
                p = jnp.dot(lhs, w_ref[dh * 3 + dw],
                            preferred_element_type=jnp.float32)
                acc = p if acc is None else acc + p
        return acc                                                  # (rows*W, Cp) f32

    # ---- conv1 + bias + ReLU on TH+2 rows (image rows t*TH-1 .. t*TH+TH) ----
    h = jnp.maximum(conv3x3(sv, R1, w1_ref) + b1_ref[0], 0.0)
    h_ref[...] = h.reshape(R1, W, Cp).astype(jnp.bfloat16)

    # conv2's zero row padding at the image border.
    @pl.when(t == 0)
    def _():
        h_ref[0, :, :] = jnp.zeros((W, Cp), jnp.bfloat16)

    @pl.when(t == T - 1)
    def _():
        h_ref[R1 - 1, :, :] = jnp.zeros((W, Cp), jnp.bfloat16)

    # ---- conv2 + bias + residual skip + ReLU ----
    c2 = conv3x3(h_ref, TH, w2_ref) + b2_ref[0]
    skip = sv[pl.ds(HALO, TH), :, :].reshape(TH * W, Cp).astype(jnp.float32)
    o_ref[0] = jnp.maximum(c2 + skip, 0.0).reshape(TH, W, Cp).astype(o_ref.dtype)


def residual_block(x, w1, b1, w2, b2, vmem_budget, rows_cap=32):
    """Fused y = ReLU(conv3x3(ReLU(conv3x3(x)+b1)) + b2 + x) on channel-padded NHWC."""
    N, H, W, Cp = x.shape
    assert W % 8 == 0 and H >= HALO

    def need(th):
        return (2 * (th + 2 * HALO) * W * Cp * 2   # double-buffered input slabs
                + (th + 2) * W * Cp * 2            # h scratch (bf16)
                + (th + 2) * W * Cp * (4 + 3 * 2)  # f32 acc + shifted tap operands
                + 2 * th * W * Cp * 2              # double-buffered output tile
                + 4 * 9 * Cp * Cp * 2)             # weights

    th = _largest_divisor_leq(H, rows_cap)
    while th > 1 and need(th) > (vmem_budget * 6) // 10:
        th = _largest_divisor_leq(H, th - 1)

    kernel = functools.partial(_residual_block_kernel, TH=th, H=H, W=W, Cp=Cp)
    return pl.pallas_call(
        kernel,
        out_shape=jax.ShapeDtypeStruct((N, H, W, Cp), jnp.bfloat16),
        grid=(N, H // th),
        in_specs=[
            pl.BlockSpec(memory_space=pl.ANY),                      # activation in HBM
            pl.BlockSpec((9, Cp, Cp), lambda n, t: (0, 0, 0)),
            pl.BlockSpec((1, Cp), lambda n, t: (0, 0)),
            pl.BlockSpec((9, Cp, Cp), lambda n, t: (0, 0, 0)),
            pl.BlockSpec((1, Cp), lambda n, t: (0, 0)),
        ],
        out_specs=pl.BlockSpec((1, th, W, Cp), lambda n, t: (n, t, 0, 0)),
        scratch_shapes=[
            pltpu.VMEM((2, th + 2 * HALO, W, Cp), jnp.bfloat16),    # slab (2 slots)
            pltpu.VMEM((th + 2, W, Cp), jnp.bfloat16),              # conv1 output
            pltpu.SemaphoreType.DMA((2, 3)),
        ],
        # Row-tile axis carries the manual DMA pipeline state -> keep it sequential;
        # the batch axis is megacore-parallel.
        # TODO(synk): for v7x with N == 1, split the row axis across the two TCs
        #             (self-contained per-core DMA) to use both TensorCores.
        compiler_params=pltpu.CompilerParams(
            dimension_semantics=("parallel", "arbitrary"),
            vmem_limit_bytes=vmem_budget),
    )(x, w1, b1, w2, b2)


# ----------------------------------------------------------------------------
# Module: parameters + forward
# ----------------------------------------------------------------------------
def _to_nhwc_padded_bf16(a_nchw, cp):
    a = jnp.transpose(a_nchw, (0, 2, 3, 1))
    c = a.shape[-1]
    return jnp.pad(a, ((0, 0), (0, 0), (0, 0), (0, cp - c))).astype(jnp.bfloat16)


class UnetDecoderBlockPallas:
    """Pallas TPU implementation of the PyTorch UnetDecoderBlock forward pass."""

    def __init__(self, in_channels, out_channels, key, res_rows_cap=32):
        self.in_channels = in_channels
        self.out_channels = out_channels
        self.res_rows_cap = res_rows_cap
        cin, cout = in_channels, out_channels
        ks = jax.random.split(key, 10)

        # ConvTranspose2d parameters (PyTorch layout: (Cin, Cout, 2, 2)).
        self.wt = jax.random.normal(ks[0], (cin, cout, 2, 2), jnp.float32) * (1.0 / cin) ** 0.5
        self.bt = jax.random.normal(ks[1], (cout,), jnp.float32) * 0.01

        def conv_p(kw, kb):
            w = jax.random.normal(kw, (3, 3, cout, cout), jnp.float32) * (1.0 / (9 * cout)) ** 0.5
            b = jax.random.normal(kb, (cout,), jnp.float32) * 0.01
            return w, b

        w1a, b1a = conv_p(ks[2], ks[3])
        w2a, b2a = conv_p(ks[4], ks[5])
        w1b, b1b = conv_p(ks[6], ks[7])
        w2b, b2b = conv_p(ks[8], ks[9])
        self.res1 = {"w1": w1a, "b1": b1a, "w2": w2a, "b2": b2a}
        self.res2 = {"w1": w1b, "b1": b1b, "w2": w2b, "b2": b2b}

        # ---- kernel-ready parameters (lane-padded channels, bf16 matmul operands) ----
        self.cout_p = _round_up(cout, LANE)
        cpo = self.cout_p
        bt_p = jnp.pad(self.bt, (0, cpo - cout))
        self.bt4 = jnp.tile(bt_p, 4).reshape(1, 4 * cpo).astype(jnp.float32)
        self._ct_cache = {}

        def fold(p):
            def fw(w):  # (3,3,C,C) HWIO -> (9, Cp, Cp), tap index = dh*3+dw
                wp = jnp.pad(w, ((0, 0), (0, 0), (0, cpo - cout), (0, cpo - cout)))
                return wp.reshape(9, cpo, cpo).astype(jnp.bfloat16)

            def fb(b):
                return jnp.pad(b, (0, cpo - cout)).reshape(1, cpo).astype(jnp.float32)

            return {"w1": fw(p["w1"]), "b1": fb(p["b1"]),
                    "w2": fw(p["w2"]), "b2": fb(p["b2"])}

        self.res1_k = fold(self.res1)
        self.res2_k = fold(self.res2)
        self._vmem_budget = _vmem_budget_bytes()

    def _ct_weights(self, cx, cs):
        """Split-K conv-transpose weights for the (x, s) channel split."""
        key = (cx, cs)
        if key not in self._ct_cache:
            cpo, cout = self.cout_p, self.out_channels

            def pack(w_rows, cpad):
                w = jnp.pad(w_rows, ((0, cpad - w_rows.shape[0]), (0, cpo - cout),
                                     (0, 0), (0, 0)))
                # (cin_pad, cout_p, 2, 2) -> columns ordered (dh, dw, cout)
                return jnp.transpose(w, (0, 2, 3, 1)).reshape(cpad, 4 * cpo).astype(jnp.bfloat16)

            self._ct_cache[key] = (pack(self.wt[:cx], _round_up(cx, LANE)),
                                   pack(self.wt[cx:], _round_up(cs, LANE)))
        return self._ct_cache[key]

    def __call__(self, x_nchw, s_nchw):
        cx, cs = x_nchw.shape[1], s_nchw.shape[1]
        assert cx + cs == self.in_channels
        wx, ws = self._ct_weights(cx, cs)
        budget = self._vmem_budget
        xh = _to_nhwc_padded_bf16(x_nchw, _round_up(cx, LANE))
        sh = _to_nhwc_padded_bf16(s_nchw, _round_up(cs, LANE))
        y = conv_transpose_2x2(xh, sh, wx, ws, self.bt4, self.cout_p, budget)
        # TODO(synk): fuse the two residual blocks into one pallas_call (4-row halo)
        #             to save one HBM round trip of the largest activation.
        y = residual_block(y, vmem_budget=budget, rows_cap=self.res_rows_cap,
                           **self.res1_k)
        y = residual_block(y, vmem_budget=budget, rows_cap=self.res_rows_cap,
                           **self.res2_k)
        y = y[..., :self.out_channels].astype(x_nchw.dtype)
        return jnp.transpose(y, (0, 3, 1, 2))                       # -> NCHW


# ----------------------------------------------------------------------------
# Pure-JAX reference (emulates the kernels' bf16-in / f32-accumulate matmuls and
# the bf16 inter-kernel activations so tolerances can stay tight).
# ----------------------------------------------------------------------------
def _bf16r(v):
    return v.astype(jnp.bfloat16).astype(jnp.float32)


def _conv3x3_ref(x, w):
    return jax.lax.conv_general_dilated(
        x, w, window_strides=(1, 1), padding=((1, 1), (1, 1)),
        dimension_numbers=("NHWC", "HWIO", "NHWC"),
        precision=jax.lax.Precision.HIGHEST)


def ref_forward(mod, x_nchw, s_nchw):
    xc = jnp.concatenate([x_nchw, s_nchw], axis=1)
    x = jnp.transpose(xc, (0, 2, 3, 1)).astype(jnp.float32)
    n, h, w, _ = x.shape
    cout = mod.out_channels
    # ConvTranspose2d(k=2,s=2): out[n,2h+i,2w+j,f] = sum_c x[n,h,w,c]*wt[c,f,i,j] + bt[f]
    y = jnp.einsum("nhwc,cfij->nhiwjf", _bf16r(x), _bf16r(mod.wt),
                   precision=jax.lax.Precision.HIGHEST)
    y = y.reshape(n, 2 * h, 2 * w, cout) + mod.bt
    y = _bf16r(y)                      # kernels store bf16 activations between stages
    for p in (mod.res1, mod.res2):
        hh = _bf16r(jnp.maximum(_conv3x3_ref(y, _bf16r(p["w1"])) + p["b1"], 0.0))
        y = _bf16r(jnp.maximum(_conv3x3_ref(hh, _bf16r(p["w2"])) + p["b2"] + y, 0.0))
    return jnp.transpose(y, (0, 3, 1, 2)).astype(x_nchw.dtype)


if __name__ == "__main__":
    key = jax.random.PRNGKey(0)
    k_x, k_s, k_p = jax.random.split(key, 3)

    # x and s each carry half of in_channels; concat -> in_channels.
    in_channels, out_channels = 8, 8
    x = jax.random.normal(k_x, (2, 4, 8, 8), jnp.float32)   # NCHW
    s = jax.random.normal(k_s, (2, 4, 8, 8), jnp.float32)   # NCHW

    # Small row-tile cap so the multi-tile halo-DMA pipeline path is exercised.
    mod = UnetDecoderBlockPallas(in_channels, out_channels, k_p, res_rows_cap=4)

    out = jax.block_until_ready(mod(x, s))
    assert out.shape == (2, out_channels, 16, 16), out.shape

    ref = jax.block_until_ready(ref_forward(mod, x, s))
    max_err = float(jnp.max(jnp.abs(out - ref)))
    assert jnp.allclose(out, ref, atol=5e-2, rtol=5e-2), max_err

    print("KERNEL_OK")
</pallas_src>

<mosaic_0001>
module attributes {stable_mosaic.version = 11 : i64} {
  func.func @_conv_transpose_kernel(%arg0: i32, %arg1: i32, %arg2: memref<1x64x128xbf16, #tpu.memory_space<vmem>>, %arg3: memref<1x64x128xbf16, #tpu.memory_space<vmem>>, %arg4: memref<128x512xbf16, #tpu.memory_space<vmem>>, %arg5: memref<128x512xbf16, #tpu.memory_space<vmem>>, %arg6: memref<1x512xf32, #tpu.memory_space<vmem>>, %arg7: memref<1x8x2x8x256xbf16, #tpu.memory_space<vmem>>) attributes {dimension_semantics = [#tpu.dimension_semantics<parallel>, #tpu.dimension_semantics<parallel>], iteration_bounds = array<i64: 2, 1>, scalar_prefetch = 0 : i64, scratch_operands = 0 : i64, tpu.core_type = #tpu.core_type<tc>, window_params = [{transform_indices = @transform_0, window_bounds = array<i64: 1, 64, 128>}, {transform_indices = @transform_1, window_bounds = array<i64: 1, 64, 128>}, {pipeline_mode = #tpu.pipeline_mode<synchronous>, transform_indices = @transform_2, window_bounds = array<i64: 128, 512>}, {pipeline_mode = #tpu.pipeline_mode<synchronous>, transform_indices = @transform_3, window_bounds = array<i64: 128, 512>}, {pipeline_mode = #tpu.pipeline_mode<synchronous>, transform_indices = @transform_4, window_bounds = array<i64: 1, 512>}, {transform_indices = @transform_5, window_bounds = array<i64: 1, 8, 2, 8, 256>}]} {
    %c0 = arith.constant 0 : index
    %c0_0 = arith.constant 0 : index
    %c0_1 = arith.constant 0 : index
    %0 = vector.load %arg2[%c0, %c0_0, %c0_1] : memref<1x64x128xbf16, #tpu.memory_space<vmem>>, vector<1x64x128xbf16>
    %1 = vector.shape_cast %0 : vector<1x64x128xbf16> to vector<64x128xbf16>
    %c0_2 = arith.constant 0 : index
    %c0_3 = arith.constant 0 : index
    %2 = vector.load %arg4[%c0_2, %c0_3] : memref<128x512xbf16, #tpu.memory_space<vmem>>, vector<128x512xbf16>
    %cst = arith.constant dense<0.000000e+00> : vector<64x512xf32>
    %3 = tpu.matmul %1, %2, %cst {dimension_numbers = #tpu.dot_dimension_numbers<[1], [0], [0], [1], [0, 0, 1, 1], [], []>} : vector<64x128xbf16>, vector<128x512xbf16>, vector<64x512xf32> -> vector<64x512xf32>
    %c0_4 = arith.constant 0 : index
    %c0_5 = arith.constant 0 : index
    %c0_6 = arith.constant 0 : index
    %4 = vector.load %arg3[%c0_4, %c0_5, %c0_6] : memref<1x64x128xbf16, #tpu.memory_space<vmem>>, vector<1x64x128xbf16>
    %5 = vector.shape_cast %4 : vector<1x64x128xbf16> to vector<64x128xbf16>
    %c0_7 = arith.constant 0 : index
    %c0_8 = arith.constant 0 : index
    %6 = vector.load %arg5[%c0_7, %c0_8] : memref<128x512xbf16, #tpu.memory_space<vmem>>, vector<128x512xbf16>
    %cst_9 = arith.constant dense<0.000000e+00> : vector<64x512xf32>
    %7 = tpu.matmul %5, %6, %cst_9 {dimension_numbers = #tpu.dot_dimension_numbers<[1], [0], [0], [1], [0, 0, 1, 1], [], []>} : vector<64x128xbf16>, vector<128x512xbf16>, vector<64x512xf32> -> vector<64x512xf32>
    %8 = arith.addf %3, %7 : vector<64x512xf32>
    %c0_10 = arith.constant 0 : index
    %c0_11 = arith.constant 0 : index
    %9 = vector.load %arg6[%c0_10, %c0_11] : memref<1x512xf32, #tpu.memory_space<vmem>>, vector<1x512xf32>
    %10 = vector.shape_cast %9 : vector<1x512xf32> to vector<512xf32>
    %11 = vector.shape_cast %10 : vector<512xf32> to vector<1x512xf32>
    %12 = vector.broadcast %11 : vector<1x512xf32> to vector<64x512xf32>
    %13 = arith.addf %8, %12 : vector<64x512xf32>
    %14 = arith.truncf %13 : vector<64x512xf32> to vector<64x512xbf16>
    %15 = vector.extract_strided_slice %14 {offsets = [0, 0], sizes = [64, 256], strides = [1, 1]} : vector<64x512xbf16> to vector<64x256xbf16>
    %16 = vector.shape_cast %15 : vector<64x256xbf16> to vector<8x8x256xbf16>
    %c0_12 = arith.constant 0 : index
    %c0_13 = arith.constant 0 : index
    %c0_14 = arith.constant 0 : index
    %c0_15 = arith.constant 0 : index
    %c0_16 = arith.constant 0 : index
    %17 = vector.load %arg7[%c0_12, %c0_13, %c0_14, %c0_15, %c0_16] : memref<1x8x2x8x256xbf16, #tpu.memory_space<vmem>>, vector<1x8x1x8x256xbf16>
    %18 = vector.shape_cast %17 : vector<1x8x1x8x256xbf16> to vector<8x8x256xbf16>
    %19 = vector.shape_cast %16 : vector<8x8x256xbf16> to vector<1x8x1x8x256xbf16>
    tpu.vector_store %arg7[%c0_12, %c0_13, %c0_14, %c0_15, %c0_16], %19 {strides = array<i32>} : memref<1x8x2x8x256xbf16, #tpu.memory_space<vmem>>, vector<1x8x1x8x256xbf16>,
    %20 = vector.extract_strided_slice %14 {offsets = [0, 256], sizes = [64, 256], strides = [1, 1]} : vector<64x512xbf16> to vector<64x256xbf16>
    %21 = vector.shape_cast %20 : vector<64x256xbf16> to vector<8x8x256xbf16>
    %c0_17 = arith.constant 0 : index
    %c0_18 = arith.constant 0 : index
    %c1 = arith.constant 1 : index
    %c0_19 = arith.constant 0 : index
    %c0_20 = arith.constant 0 : index
    %22 = vector.load %arg7[%c0_17, %c0_18, %c1, %c0_19, %c0_20] : memref<1x8x2x8x256xbf16, #tpu.memory_space<vmem>>, vector<1x8x1x8x256xbf16>
    %23 = vector.shape_cast %22 : vector<1x8x1x8x256xbf16> to vector<8x8x256xbf16>
    %24 = vector.shape_cast %21 : vector<8x8x256xbf16> to vector<1x8x1x8x256xbf16>
    tpu.vector_store %arg7[%c0_17, %c0_18, %c1, %c0_19, %c0_20], %24 {strides = array<i32>} : memref<1x8x2x8x256xbf16, #tpu.memory_space<vmem>>, vector<1x8x1x8x256xbf16>,
    return
  }
  func.func @transform_0(%arg0: i32, %arg1: i32) -> (i32, i32, i32) {
    %c0_i32 = arith.constant 0 : i32
    %c0_i32_0 = arith.constant 0 : i32
    return %arg0, %arg1, %c0_i32 : i32, i32, i32
  }
  func.func @transform_1(%arg0: i32, %arg1: i32) -> (i32, i32, i32) {
    %c0_i32 = arith.constant 0 : i32
    %c0_i32_0 = arith.constant 0 : i32
    return %arg0, %arg1, %c0_i32 : i32, i32, i32
  }
  func.func @transform_2(%arg0: i32, %arg1: i32) -> (i32, i32) {
    %c0_i32 = arith.constant 0 : i32
    %c0_i32_0 = arith.constant 0 : i32
    %c0_i32_1 = arith.constant 0 : i32
    return %c0_i32, %c0_i32_0 : i32, i32
  }
  func.func @transform_3(%arg0: i32, %arg1: i32) -> (i32, i32) {
    %c0_i32 = arith.constant 0 : i32
    %c0_i32_0 = arith.constant 0 : i32
    %c0_i32_1 = arith.constant 0 : i32
    return %c0_i32, %c0_i32_0 : i32, i32
  }
  func.func @transform_4(%arg0: i32, %arg1: i32) -> (i32, i32) {
    %c0_i32 = arith.constant 0 : i32
    %c0_i32_0 = arith.constant 0 : i32
    %c0_i32_1 = arith.constant 0 : i32
    return %c0_i32, %c0_i32_0 : i32, i32
  }
  func.func @transform_5(%arg0: i32, %arg1: i32) -> (i32, i32, i32, i32, i32) {
    %c0_i32 = arith.constant 0 : i32
    %c0_i32_0 = arith.constant 0 : i32
    %c0_i32_1 = arith.constant 0 : i32
    %c0_i32_2 = arith.constant 0 : i32
    return %arg0, %arg1, %c0_i32, %c0_i32_0, %c0_i32_1 : i32, i32, i32, i32, i32
  }
}

</mosaic_0001>

<llo_original>
// kernel: tpu_custom_call.1
$region0: #{tpu_custom_call.1}
  #allocation0 [shape = 'u32[]', space=smem, size = 0x4, offset = 0x4, fixed_abs, tag = 'smem constant byte address 0x4 - core index']
  #allocation1 [shape = 'u32[144,128]{1,0:T(1,128)}', space=vmem, size = 0x12000, scoped, tag = 'internal scratch']
  %s0 = inlined_call_operand.hbm [shape: bf16[2,64,128], index: 0, kind: input, shape index: {}]
  %s1 = inlined_call_operand.hbm [shape: bf16[2,64,128], index: 1, kind: input, shape index: {}]
  %s2 = inlined_call_operand.hbm [shape: bf16[128,512], index: 2, kind: input, shape index: {}]
  %s3 = inlined_call_operand.hbm [shape: bf16[128,512], index: 3, kind: input, shape index: {}]
  %s4 = inlined_call_operand.vmem [shape: f32[1,512], index: 4, kind: input, shape index: {}]
  %s5 = inlined_call_operand.hbm [shape: bf16[2,8,2,8,256], index: 5, kind: output, shape index: {}]
  %s6 = sld [smem:[#allocation0]]
  $region69: #{tpu_custom_call.1} parent=0
    _
  %s8 = ssub.s32 1, %s6
  %s9 = scalar_select 0, %s8, %s6
  $region1: #{tpu_custom_call.1} parent=0
    #allocation2 [shape = 'u8[32768]{0}', space=vmem, size = 0x8000, scoped, tag = 'input window, operand 0']
    #allocation3 [shape = 's32[2]{0}', space=sflag, size = 0x8, scoped, tag = 'scoped memory for tpu_custom_call.1']
    #allocation4 [shape = 's32[2]{0}', space=sflag, size = 0x8, scoped, tag = 'scoped memory for tpu_custom_call.1']
    #allocation5 [shape = 'u8[32768]{0}', space=vmem, size = 0x8000, scoped, tag = 'input window, operand 1']
    #allocation6 [shape = 's32[2]{0}', space=sflag, size = 0x8, scoped, tag = 'scoped memory for tpu_custom_call.1']
    #allocation7 [shape = 'u8[131072]{0}', space=vmem, size = 0x20000, scoped, tag = 'input window, operand 2, single buffered']
    #allocation8 [shape = 'u8[131072]{0}', space=vmem, size = 0x20000, scoped, tag = 'input window, operand 3, single buffered']
    #allocation9 [shape = 's32[1]{0}', space=sflag, size = 0x4, scoped, tag = 'scoped memory for tpu_custom_call.1']
    #allocation10 [shape = 'u8[131072]{0}', space=vmem, size = 0x20000, scoped, tag = 'output window, operand 0']
    %10 = vsyncpa [#allocation3], 0
    %s11 = scalar_lea.sflag [#allocation3], 1
    %12 = vsyncpa %s11, 0
    %13 = vsyncpa [#allocation6], 0
    %s14 = scalar_lea.sflag [#allocation6], 1
    %15 = vsyncpa %s14, 0
    %16 = vsyncpa [#allocation9], 0
    %17 = vsyncpa [#allocation4], 0
    %s18 = scalar_lea.sflag [#allocation4], 1
    %19 = vsyncpa %s18, 0
    loop: start=0, step=1, limit=4
    $region2: #{tpu_custom_call.1} parent=1 // loop_pre_header
      _
    $region3: #{tpu_custom_call.1} parent=1 // loop_header
      %s21 = sphi 0, %s25
      %p22 = scmp.ge.s32.totalorder %s21, 4
      %s28 = sphi 0, %s40
      %s29 = sphi 0, %s36
      %s30 = sphi 0, %s28
      %s31 = sphi 0, %s29
      %s32 = sphi 0, %s30
      %s33 = sphi 0, %s31
      %s45 = sphi 0, %s47
      %s48 = sphi 0, %s45
      %s49 = sphi 0, %s48
      %s65 = sphi 0, %s49
      %s73 = sphi 0, %s75
      %s76 = sphi 0, %s73
      %s77 = sphi 0, %s76
      %s93 = sphi 0, %s77
      %s97 = sphi 0, %s97
      %s99 = sphi 0, %s97
      %s100 = sphi 0, %s99
      %s114 = sphi 0, %s100
      %s118 = sphi 0, %s118
      %s120 = sphi 0, %s118
      %s121 = sphi 0, %s120
      %s135 = sphi 0, %s121
      %s139 = sphi 0, %s139
      %s141 = sphi 0, %s139
      %s142 = sphi 0, %s141
      %s156 = sphi 0, %s142
      %s164 = sphi 0, %s166
      %s167 = sphi 0, %s164
      %s168 = sphi 0, %s167
      %s184 = sphi 0, %s168
    $region4: #{tpu_custom_call.1} parent=1 // loop_header_branch
      %24 = sbr.rel (%p22) target = $region8
    $region5: #{tpu_custom_call.1} parent=1 // loop_body
      %s26 = ssub.s32 %s21, 1
      %s27 = ssub.s32 %s21, 2
      %s34 = sadd.s32 1, %s29
      %p35 = scmp.ge.s32.totalorder %s34, 1
      %s36 = scalar_select %p35, 0, %s34
      %s37 = sadd.s32 1, %s28
      %s38 = scalar_select %p35, %s37, %s28
      %p39 = scmp.ge.s32.totalorder %s38, 2
      %s40 = scalar_select %p39, 0, %s38
      %s41 = ssub.s32 %s28, %s40
      %s42 = ssub.s32 %s29, %s36
      %s43 = sor.u32 %s41, %s42
      %p44 = scmp.eq.s32.totalorder %s43, 0
      %s46 = sadd.s32 %s45, 1
      %s47 = scalar_select %p44, %s45, %s46
      %p50 = pneg %p44
      %p51 = scmp.eq.s32.totalorder %s21, 1
      %p52 = por %p50, %p51
      %p53 = scmp.ne.s32.totalorder %s45, %s48
      %p54 = scmp.eq.s32.totalorder %s21, 0
      %p55 = por %p53, %p54
      %p56 = scmp.ne.s32.totalorder %s45, %s48
      %p57 = scmp.eq.s32.totalorder %s26, 1
      %p58 = por %p56, %p57
      %p59 = scmp.ne.s32.totalorder %s48, %s49
      %p60 = scmp.eq.s32.totalorder %s26, 0
      %p61 = por %p59, %p60
      %p62 = scmp.ne.s32.totalorder %s48, %s49
      %p63 = scmp.eq.s32.totalorder %s27, 1
      %p64 = por %p62, %p63
      %p66 = scmp.ne.s32.totalorder %s49, %s65
      %p67 = scmp.eq.s32.totalorder %s27, 0
      %p68 = por %p66, %p67
      %s69 = ssub.s32 %s28, %s40
      %s70 = ssub.s32 %s29, %s36
      %s71 = sor.u32 %s69, %s70
      %p72 = scmp.eq.s32.totalorder %s71, 0
      %s74 = sadd.s32 %s73, 1
      %s75 = scalar_select %p72, %s73, %s74
      %p78 = pneg %p72
      %p79 = scmp.eq.s32.totalorder %s21, 1
      %p80 = por %p78, %p79
      %p81 = scmp.ne.s32.totalorder %s73, %s76
      %p82 = scmp.eq.s32.totalorder %s21, 0
      %p83 = por %p81, %p82
      %p84 = scmp.ne.s32.totalorder %s73, %s76
      %p85 = scmp.eq.s32.totalorder %s26, 1
      %p86 = por %p84, %p85
      %p87 = scmp.ne.s32.totalorder %s76, %s77
      %p88 = scmp.eq.s32.totalorder %s26, 0
      %p89 = por %p87, %p88
      %p90 = scmp.ne.s32.totalorder %s76, %s77
      %p91 = scmp.eq.s32.totalorder %s27, 1
      %p92 = por %p90, %p91
      %p94 = scmp.ne.s32.totalorder %s77, %s93
      %p95 = scmp.eq.s32.totalorder %s27, 0
      %p96 = por %p94, %p95
      %s98 = sadd.s32 %s97, 1
      %p101 = scmp.eq.s32.totalorder %s21, 1
      %p102 = scmp.ne.s32.totalorder %s97, %s99
      %p103 = scmp.eq.s32.totalorder %s21, 0
      %p104 = por %p102, %p103
      %p105 = scmp.ne.s32.totalorder %s97, %s99
      %p106 = scmp.eq.s32.totalorder %s26, 1
      %p107 = por %p105, %p106
      %p108 = scmp.ne.s32.totalorder %s99, %s100
      %p109 = scmp.eq.s32.totalorder %s26, 0
      %p110 = por %p108, %p109
      %p111 = scmp.ne.s32.totalorder %s99, %s100
      %p112 = scmp.eq.s32.totalorder %s27, 1
      %p113 = por %p111, %p112
      %p115 = scmp.ne.s32.totalorder %s100, %s114
      %p116 = scmp.eq.s32.totalorder %s27, 0
      %p117 = por %p115, %p116
      %s119 = sadd.s32 %s118, 1
      %p122 = scmp.eq.s32.totalorder %s21, 1
      %p123 = scmp.ne.s32.totalorder %s118, %s120
      %p124 = scmp.eq.s32.totalorder %s21, 0
      %p125 = por %p123, %p124
      %p126 = scmp.ne.s32.totalorder %s118, %s120
      %p127 = scmp.eq.s32.totalorder %s26, 1
      %p128 = por %p126, %p127
      %p129 = scmp.ne.s32.totalorder %s120, %s121
      %p130 = scmp.eq.s32.totalorder %s26, 0
      %p131 = por %p129, %p130
      %p132 = scmp.ne.s32.totalorder %s120, %s121
      %p133 = scmp.eq.s32.totalorder %s27, 1
      %p134 = por %p132, %p133
      %p136 = scmp.ne.s32.totalorder %s121, %s135
      %p137 = scmp.eq.s32.totalorder %s27, 0
      %p138 = por %p136, %p137
      %s140 = sadd.s32 %s139, 1
      %p143 = scmp.eq.s32.totalorder %s21, 1
      %p144 = scmp.ne.s32.totalorder %s139, %s141
      %p145 = scmp.eq.s32.totalorder %s21, 0
      %p146 = por %p144, %p145
      %p147 = scmp.ne.s32.totalorder %s139, %s141
      %p148 = scmp.eq.s32.totalorder %s26, 1
      %p149 = por %p147, %p148
      %p150 = scmp.ne.s32.totalorder %s141, %s142
      %p151 = scmp.eq.s32.totalorder %s26, 0
      %p152 = por %p150, %p151
      %p153 = scmp.ne.s32.totalorder %s141, %s142
      %p154 = scmp.eq.s32.totalorder %s27, 1
      %p155 = por %p153, %p154
      %p157 = scmp.ne.s32.totalorder %s142, %s156
      %p158 = scmp.eq.s32.totalorder %s27, 0
      %p159 = por %p157, %p158
      %s160 = ssub.s32 %s28, %s40
      %s161 = ssub.s32 %s29, %s36
      %s162 = sor.u32 %s160, %s161
      %p163 = scmp.eq.s32.totalorder %s162, 0
      %s165 = sadd.s32 %s164, 1
      %s166 = scalar_select %p163, %s164, %s165
      %p169 = pneg %p163
      %p170 = scmp.eq.s32.totalorder %s21, 1
      %p171 = por %p169, %p170
      %p172 = scmp.ne.s32.totalorder %s164, %s167
      %p173 = scmp.eq.s32.totalorder %s21, 0
      %p174 = por %p172, %p173
      %p175 = scmp.ne.s32.totalorder %s164, %s167
      %p176 = scmp.eq.s32.totalorder %s26, 1
      %p177 = por %p175, %p176
      %p178 = scmp.ne.s32.totalorder %s167, %s168
      %p179 = scmp.eq.s32.totalorder %s26, 0
      %p180 = por %p178, %p179
      %p181 = scmp.ne.s32.totalorder %s167, %s168
      %p182 = scmp.eq.s32.totalorder %s27, 1
      %p183 = por %p181, %p182
      %p185 = scmp.ne.s32.totalorder %s168, %s184
      %p186 = scmp.eq.s32.totalorder %s27, 0
      %p187 = por %p185, %p186
      %p188 = scmp.le.s32.totalorder 1, %s21
      %p189 = scmp.lt.s32.totalorder %s21, 3
      %p190 = pnand %p188, %p189
      %p191 = pneg %p190
      // Predicated region
      $region9: #{tpu_custom_call.1} parent=5 // pred_check
        _
      $region10: #{tpu_custom_call.1} parent=5 // pred_check_branch
        %193 = sbr.rel (%p190) target = $region12
      $region11: #{tpu_custom_call.1} parent=5 // pred_region
        %s194 = ssub.s32 %s21, 1
        // Predicated region
        $region13: #{tpu_custom_call.1} parent=11 // pred_check
          %p195 = pneg %p110
        $region14: #{tpu_custom_call.1} parent=11 // pred_check_branch
          %197 = sbr.rel (%p195) target = $region16
        $region15: #{tpu_custom_call.1} parent=11 // pred_region
          %s199 = ssub.s32 4096, 4096
          %200 = vsyncadd [#allocation6], %s199
          %s201 = sshll.u32 [#allocation7], 4
          %s202 = int_to_ptr.vmem [resolvable:$true] %s201
          %207 = dma.hbm_to_vmem [thread:$0]  %s2, 4096, %s202, [#allocation6], 256, 256, 16
        $region16: #{tpu_custom_call.1} parent=11 // pred_fallthru
          _
        // Predicated region
        $region17: #{tpu_custom_call.1} parent=11 // pred_check
          %p208 = pneg %p131
        $region18: #{tpu_custom_call.1} parent=11 // pred_check_branch
          %210 = sbr.rel (%p208) target = $region20
        $region19: #{tpu_custom_call.1} parent=11 // pred_region
          %s212 = ssub.s32 4096, 4096
          %213 = vsyncadd [#allocation9], %s212
          %s214 = sshll.u32 [#allocation8], 4
          %s215 = int_to_ptr.vmem [resolvable:$true] %s214
          %220 = dma.hbm_to_vmem [thread:$0]  %s3, 4096, %s215, [#allocation9], 256, 256, 16
        $region20: #{tpu_custom_call.1} parent=11 // pred_fallthru
          _
        // Predicated region
        $region21: #{tpu_custom_call.1} parent=11 // pred_check
          %p221 = pneg %p152
        $region22: #{tpu_custom_call.1} parent=11 // pred_check_branch
          %223 = sbr.rel (%p221) target = $region24
        $region23: #{tpu_custom_call.1} parent=11 // pred_region
          _
        $region24: #{tpu_custom_call.1} parent=11 // pred_fallthru
          _
      $region12: #{tpu_custom_call.1} parent=5 // pred_fallthru
        _
      %p224 = scmp.lt.s32.totalorder %s21, 2
      // Predicated region
      $region25: #{tpu_custom_call.1} parent=5 // pred_check
        %p225 = pneg %p224
      $region26: #{tpu_custom_call.1} parent=5 // pred_check_branch
        %227 = sbr.rel (%p225) target = $region28
      $region27: #{tpu_custom_call.1} parent=5 // pred_region
        // Predicated region
        $region29: #{tpu_custom_call.1} parent=27 // pred_check
          %p228 = pneg %p55
        $region30: #{tpu_custom_call.1} parent=27 // pred_check_branch
          %230 = sbr.rel (%p228) target = $region32
        $region31: #{tpu_custom_call.1} parent=27 // pred_region
          %s231 = sand.u32 %s45, 1
          %s232 = scalar_lea.sflag [#allocation3], %s231
          %s233 = sand.u32 %s45, 1
          %s234 = smul.addr %s233, 32
          %s235 = scalar_lea.vmem [#allocation2], %s234
          %s236 = smul.u32 8, %s29
          %s238 = ssub.s32 512, 512
          %239 = vsyncadd %s232, %s238
          %s240 = smul.addr %s28, 8
          %s241 = sadd.s32 %s236, %s240
          %s242 = smul.addr %s241, 64
          %s243 = scalar_lea.hbm %s0, %s242
          %s244 = sshll.u32 %s235, 4
          %s245 = int_to_ptr.vmem [resolvable:$true] %s244
          %250 = dma.hbm_to_vmem [thread:$0]  %s243, 512, %s245, %s232, 64, 64, 4
        $region32: #{tpu_custom_call.1} parent=27 // pred_fallthru
          _
        // Predicated region
        $region33: #{tpu_custom_call.1} parent=27 // pred_check
          %p251 = pneg %p83
        $region34: #{tpu_custom_call.1} parent=27 // pred_check_branch
          %253 = sbr.rel (%p251) target = $region36
        $region35: #{tpu_custom_call.1} parent=27 // pred_region
          %s254 = sand.u32 %s21, 1
          %s255 = scalar_lea.sflag [#allocation6], %s254
          %s256 = sand.u32 %s73, 1
          %s257 = smul.addr %s256, 32
          %s258 = scalar_lea.vmem [#allocation5], %s257
          %s259 = smul.u32 8, %s29
          %s261 = ssub.s32 512, 512
          %262 = vsyncadd %s255, %s261
          %s263 = smul.addr %s28, 8
          %s264 = sadd.s32 %s259, %s263
          %s265 = smul.addr %s264, 64
          %s266 = scalar_lea.hbm %s1, %s265
          %s267 = sshll.u32 %s258, 4
          %s268 = int_to_ptr.vmem [resolvable:$true] %s267
          %273 = dma.hbm_to_vmem [thread:$0]  %s266, 512, %s268, %s255, 64, 64, 4
        $region36: #{tpu_custom_call.1} parent=27 // pred_fallthru
          _
      $region28: #{tpu_custom_call.1} parent=5 // pred_fallthru
        _
      %p274 = scmp.le.s32.totalorder 1, %s21
      %p275 = scmp.lt.s32.totalorder %s21, 3
      %p276 = pnand %p274, %p275
      %p277 = pneg %p276
      // Predicated region
      $region37: #{tpu_custom_call.1} parent=5 // pred_check
        _
      $region38: #{tpu_custom_call.1} parent=5 // pred_check_branch
        %279 = sbr.rel (%p276) target = $region40
      $region39: #{tpu_custom_call.1} parent=5 // pred_region
        %s280 = ssub.s32 %s21, 1
        %s281 = sand.u32 %s48, 1
        %s282 = scalar_lea.sflag [#allocation3], %s281
        %s283 = sand.u32 %s48, 1
        %s284 = smul.addr %s283, 32
        %s285 = scalar_lea.vmem [#allocation2], %s284
        // Predicated region
        $region41: #{tpu_custom_call.1} parent=39 // pred_check
          %p286 = pneg %p61
        $region42: #{tpu_custom_call.1} parent=39 // pred_check_branch
          %288 = sbr.rel (%p286) target = $region44
        $region43: #{tpu_custom_call.1} parent=39 // pred_region
          %289 = dma.done %s282, 512
        $region44: #{tpu_custom_call.1} parent=39 // pred_fallthru
          _
        %s290 = sand.u32 %s26, 1
        %s291 = scalar_lea.sflag [#allocation6], %s290
        %s292 = sand.u32 %s76, 1
        %s293 = smul.addr %s292, 32
        %s294 = scalar_lea.vmem [#allocation5], %s293
        // Predicated region
        $region45: #{tpu_custom_call.1} parent=39 // pred_check
          %p295 = pneg %p89
        $region46: #{tpu_custom_call.1} parent=39 // pred_check_branch
          %297 = sbr.rel (%p295) target = $region48
        $region47: #{tpu_custom_call.1} parent=39 // pred_region
          %298 = dma.done %s291, 512
        $region48: #{tpu_custom_call.1} parent=39 // pred_fallthru
          _
        // Predicated region
        $region49: #{tpu_custom_call.1} parent=39 // pred_check
          %p299 = pneg %p110
        $region50: #{tpu_custom_call.1} parent=39 // pred_check_branch
          %301 = sbr.rel (%p299) target = $region52
        $region51: #{tpu_custom_call.1} parent=39 // pred_region
          %302 = dma.done [#allocation6], 4096
        $region52: #{tpu_custom_call.1} parent=39 // pred_fallthru
          _
        // Predicated region
        $region53: #{tpu_custom_call.1} parent=39 // pred_check
          %p303 = pneg %p131
        $region54: #{tpu_custom_call.1} parent=39 // pred_check_branch
          %305 = sbr.rel (%p303) target = $region56
        $region55: #{tpu_custom_call.1} parent=39 // pred_region
          %306 = dma.done [#allocation9], 4096
        $region56: #{tpu_custom_call.1} parent=39 // pred_fallthru
          _
        %s307 = sand.u32 %s48, 1
        %s308 = scalar_lea.sflag [#allocation3], %s307
        %s309 = sand.u32 %s48, 1
        %s310 = smul.addr %s309, 32
        %s311 = scalar_lea.vmem [#allocation2], %s310
        %p312 = pneg %p61
        %p313 = pneg %p58
        %s314 = sand.u32 %s26, 1
        %s315 = scalar_lea.sflag [#allocation6], %s314
        %s316 = sand.u32 %s76, 1
        %s317 = smul.addr %s316, 32
        %s318 = scalar_lea.vmem [#allocation5], %s317
        %p319 = pneg %p89
        %p320 = pneg %p86
        %p321 = pneg %p110
        %p322 = pneg %p107
        %p323 = pneg %p131
        %p324 = pneg %p128
        %p325 = pneg %p152
        %p326 = pneg %p149
        %p327 = pneg %p180
        %p328 = pneg %p177
        %s329 = sand.u32 %s167, 1
        %s330 = scalar_lea.sflag [#allocation4], %s329
        %s331 = sand.u32 %s167, 1
        %s332 = smul.addr %s331, 128
        %s333 = scalar_lea.vmem [#allocation10], %s332
        %s334 = smul.u32 8, %s31
        %s335 = smul.u32 8, %s31
        %s336 = smul.u32 8, %s31
        %v338 = vld [vmem:[%s285] sm:$0xf]
        %v339 = vld [vmem:[%s285 + $0x4] sm:$0xf]
        %v340 = vld [vmem:[%s285 + $0x8] sm:$0xf]
        %v341 = vld [vmem:[%s285 + $0xc] sm:$0xf]
        %v342 = vld [vmem:[%s285 + $0x10] sm:$0xf]
        %v343 = vld [vmem:[%s285 + $0x14] sm:$0xf]
        %v344 = vld [vmem:[%s285 + $0x18] sm:$0xf]
        %v345 = vld [vmem:[%s285 + $0x1c] sm:$0xf]
        %v346 = vld [vmem:[#allocation7] sm:$0xff]
        %v347 = vld [vmem:[#allocation7 + $0x8] sm:$0xff]
        %v348 = vld [vmem:[#allocation7 + $0x10] sm:$0xff]
        %v349 = vld [vmem:[#allocation7 + $0x18] sm:$0xff]
        %v350 = vld [vmem:[#allocation7 + $0x20] sm:$0xff]
        %v351 = vld [vmem:[#allocation7 + $0x28] sm:$0xff]
        %v352 = vld [vmem:[#allocation7 + $0x30] sm:$0xff]
        %v353 = vld [vmem:[#allocation7 + $0x38] sm:$0xff]
        %v354 = vld [vmem:[#allocation7 + $0x40] sm:$0xff]
        %v355 = vld [vmem:[#allocation7 + $0x48] sm:$0xff]
        %v356 = vld [vmem:[#allocation7 + $0x50] sm:$0xff]
        %v357 = vld [vmem:[#allocation7 + $0x58] sm:$0xff]
        %v358 = vld [vmem:[#allocation7 + $0x60] sm:$0xff]
        %v359 = vld [vmem:[#allocation7 + $0x68] sm:$0xff]
        %v360 = vld [vmem:[#allocation7 + $0x70] sm:$0xff]
        %v361 = vld [vmem:[#allocation7 + $0x78] sm:$0xff]
        %v362 = vld [vmem:[#allocation7 + $0x80] sm:$0xff]
        %v363 = vld [vmem:[#allocation7 + $0x88] sm:$0xff]
        %v364 = vld [vmem:[#allocation7 + $0x90] sm:$0xff]
        %v365 = vld [vmem:[#allocation7 + $0x98] sm:$0xff]
        %v366 = vld [vmem:[#allocation7 + $0xa0] sm:$0xff]
        %v367 = vld [vmem:[#allocation7 + $0xa8] sm:$0xff]
        %v368 = vld [vmem:[#allocation7 + $0xb0] sm:$0xff]
        %v369 = vld [vmem:[#allocation7 + $0xb8] sm:$0xff]
        %v370 = vld [vmem:[#allocation7 + $0xc0] sm:$0xff]
        %v371 = vld [vmem:[#allocation7 + $0xc8] sm:$0xff]
        %v372 = vld [vmem:[#allocation7 + $0xd0] sm:$0xff]
        %v373 = vld [vmem:[#allocation7 + $0xd8] sm:$0xff]
        %v374 = vld [vmem:[#allocation7 + $0xe0] sm:$0xff]
        %v375 = vld [vmem:[#allocation7 + $0xe8] sm:$0xff]
        %v376 = vld [vmem:[#allocation7 + $0xf0] sm:$0xff]
        %v377 = vld [vmem:[#allocation7 + $0xf8] sm:$0xff]
        %v378 = vld [vmem:[%s294] sm:$0xf]
        %v379 = vld [vmem:[%s294 + $0x4] sm:$0xf]
        %v380 = vld [vmem:[%s294 + $0x8] sm:$0xf]
        %v381 = vld [vmem:[%s294 + $0xc] sm:$0xf]
        %v382 = vld [vmem:[%s294 + $0x10] sm:$0xf]
        %v383 = vld [vmem:[%s294 + $0x14] sm:$0xf]
        %v384 = vld [vmem:[%s294 + $0x18] sm:$0xf]
        %v385 = vld [vmem:[%s294 + $0x1c] sm:$0xf]
        %v386 = vld [vmem:[#allocation8] sm:$0xff]
        %v387 = vld [vmem:[#allocation8 + $0x8] sm:$0xff]
        %v388 = vld [vmem:[#allocation8 + $0x10] sm:$0xff]
        %v389 = vld [vmem:[#allocation8 + $0x18] sm:$0xff]
        %v390 = vld [vmem:[#allocation8 + $0x20] sm:$0xff]
        %v391 = vld [vmem:[#allocation8 + $0x28] sm:$0xff]
        %v392 = vld [vmem:[#allocation8 + $0x30] sm:$0xff]
        %v393 = vld [vmem:[#allocation8 + $0x38] sm:$0xff]
        %v394 = vld [vmem:[#allocation8 + $0x40] sm:$0xff]
        %v395 = vld [vmem:[#allocation8 + $0x48] sm:$0xff]
        %v396 = vld [vmem:[#allocation8 + $0x50] sm:$0xff]
        %v397 = vld [vmem:[#allocation8 + $0x58] sm:$0xff]
        %v398 = vld [vmem:[#allocation8 + $0x60] sm:$0xff]
        %v399 = vld [vmem:[#allocation8 + $0x68] sm:$0xff]
        %v400 = vld [vmem:[#allocation8 + $0x70] sm:$0xff]
        %v401 = vld [vmem:[#allocation8 + $0x78] sm:$0xff]
        %v402 = vld [vmem:[#allocation8 + $0x80] sm:$0xff]
        %v403 = vld [vmem:[#allocation8 + $0x88] sm:$0xff]
        %v404 = vld [vmem:[#allocation8 + $0x90] sm:$0xff]
        %v405 = vld [vmem:[#allocation8 + $0x98] sm:$0xff]
        %v406 = vld [vmem:[#allocation8 + $0xa0] sm:$0xff]
        %v407 = vld [vmem:[#allocation8 + $0xa8] sm:$0xff]
        %v408 = vld [vmem:[#allocation8 + $0xb0] sm:$0xff]
        %v409 = vld [vmem:[#allocation8 + $0xb8] sm:$0xff]
        %v410 = vld [vmem:[#allocation8 + $0xc0] sm:$0xff]
        %v411 = vld [vmem:[#allocation8 + $0xc8] sm:$0xff]
        %v412 = vld [vmem:[#allocation8 + $0xd0] sm:$0xff]
        %v413 = vld [vmem:[#allocation8 + $0xd8] sm:$0xff]
        %v414 = vld [vmem:[#allocation8 + $0xe0] sm:$0xff]
        %v415 = vld [vmem:[#allocation8 + $0xe8] sm:$0xff]
        %v416 = vld [vmem:[#allocation8 + $0xf0] sm:$0xff]
        %v417 = vld [vmem:[#allocation8 + $0xf8] sm:$0xff]
        %v426 = vunpack.c.l.b16 %v378
        %v427 = vunpack.c.l.b16 %v379
        %v428 = vunpack.c.l.b16 %v380
        %v429 = vunpack.c.l.b16 %v381
        %v430 = vunpack.c.l.b16 %v382
        %v431 = vunpack.c.l.b16 %v383
        %v432 = vunpack.c.l.b16 %v384
        %v433 = vunpack.c.l.b16 %v385
        %v434 = vpack.c.b16 %v427, %v426
        %v435 = vpack.c.b16 %v429, %v428
        %v436 = vpack.c.b16 %v431, %v430
        %v437 = vpack.c.b16 %v433, %v432
        %v474 = vunpack.c.l.b16 %v386
        %v475 = vunpack.c.h.b16 %v386
        %v476 = vunpack.c.l.b16 %v387
        %v477 = vunpack.c.h.b16 %v387
        %v478 = vunpack.c.l.b16 %v388
        %v479 = vunpack.c.h.b16 %v388
        %v480 = vunpack.c.l.b16 %v389
        %v481 = vunpack.c.h.b16 %v389
        %v482 = vunpack.c.l.b16 %v390
        %v483 = vunpack.c.h.b16 %v390
        %v484 = vunpack.c.l.b16 %v391
        %v485 = vunpack.c.h.b16 %v391
        %v486 = vunpack.c.l.b16 %v392
        %v487 = vunpack.c.h.b16 %v392
        %v488 = vunpack.c.l.b16 %v393
        %v489 = vunpack.c.h.b16 %v393
        %v490 = vunpack.c.l.b16 %v394
        %v491 = vunpack.c.h.b16 %v394
        %v492 = vunpack.c.l.b16 %v395
        %v493 = vunpack.c.h.b16 %v395
        %v494 = vunpack.c.l.b16 %v396
        %v495 = vunpack.c.h.b16 %v396
        %v496 = vunpack.c.l.b16 %v397
        %v497 = vunpack.c.h.b16 %v397
        %v498 = vunpack.c.l.b16 %v398
        %v499 = vunpack.c.h.b16 %v398
        %v500 = vunpack.c.l.b16 %v399
        %v501 = vunpack.c.h.b16 %v399
        %v502 = vunpack.c.l.b16 %v400
        %v503 = vunpack.c.h.b16 %v400
        %v504 = vunpack.c.l.b16 %v401
        %v505 = vunpack.c.h.b16 %v401
        %v506 = vunpack.c.l.b16 %v402
        %v507 = vunpack.c.h.b16 %v402
        %v508 = vunpack.c.l.b16 %v403
        %v509 = vunpack.c.h.b16 %v403
        %v510 = vunpack.c.l.b16 %v404
        %v511 = vunpack.c.h.b16 %v404
        %v512 = vunpack.c.l.b16 %v405
        %v513 = vunpack.c.h.b16 %v405
        %v514 = vunpack.c.l.b16 %v406
        %v515 = vunpack.c.h.b16 %v406
        %v516 = vunpack.c.l.b16 %v407
        %v517 = vunpack.c.h.b16 %v407
        %v518 = vunpack.c.l.b16 %v408
        %v519 = vunpack.c.h.b16 %v408
        %v520 = vunpack.c.l.b16 %v409
        %v521 = vunpack.c.h.b16 %v409
        %v522 = vunpack.c.l.b16 %v410
        %v523 = vunpack.c.h.b16 %v410
        %v524 = vunpack.c.l.b16 %v411
        %v525 = vunpack.c.h.b16 %v411
        %v526 = vunpack.c.l.b16 %v412
        %v527 = vunpack.c.h.b16 %v412
        %v528 = vunpack.c.l.b16 %v413
        %v529 = vunpack.c.h.b16 %v413
        %v530 = vunpack.c.l.b16 %v414
        %v531 = vunpack.c.h.b16 %v414
        %v532 = vunpack.c.l.b16 %v415
        %v533 = vunpack.c.h.b16 %v415
        %v534 = vunpack.c.l.b16 %v416
        %v535 = vunpack.c.h.b16 %v416
        %v536 = vunpack.c.l.b16 %v417
        %v537 = vunpack.c.h.b16 %v417
        %v538 = vpack.c.b16 %v478, %v474
        %v539 = vpack.c.b16 %v479, %v475
        %v540 = vpack.c.b16 %v480, %v476
        %v541 = vpack.c.b16 %v481, %v477
        %v542 = vpack.c.b16 %v486, %v482
        %v543 = vpack.c.b16 %v487, %v483
        %v544 = vpack.c.b16 %v488, %v484
        %v545 = vpack.c.b16 %v489, %v485
        %v546 = vpack.c.b16 %v494, %v490
        %v547 = vpack.c.b16 %v495, %v491
        %v548 = vpack.c.b16 %v496, %v492
        %v549 = vpack.c.b16 %v497, %v493
        %v550 = vpack.c.b16 %v502, %v498
        %v551 = vpack.c.b16 %v503, %v499
        %v552 = vpack.c.b16 %v504, %v500
        %v553 = vpack.c.b16 %v505, %v501
        %v554 = vpack.c.b16 %v510, %v506
        %v555 = vpack.c.b16 %v511, %v507
        %v556 = vpack.c.b16 %v512, %v508
        %v557 = vpack.c.b16 %v513, %v509
        %v558 = vpack.c.b16 %v518, %v514
        %v559 = vpack.c.b16 %v519, %v515
        %v560 = vpack.c.b16 %v520, %v516
        %v561 = vpack.c.b16 %v521, %v517
        %v562 = vpack.c.b16 %v526, %v522
        %v563 = vpack.c.b16 %v527, %v523
        %v564 = vpack.c.b16 %v528, %v524
        %v565 = vpack.c.b16 %v529, %v525
        %v566 = vpack.c.b16 %v534, %v530
        %v567 = vpack.c.b16 %v535, %v531
        %v568 = vpack.c.b16 %v536, %v532
        %v569 = vpack.c.b16 %v537, %v533
        %602 = vmatprep.subr.bf16.mxu0 %v539
        %603 = vmatpush1.bf16.msra.mxu0 %v538
        %604 = vmatprep.subr.bf16.mxu0 %v543
        %605 = vmatpush1.bf16.msra.mxu0 %v542
        %606 = vmatprep.subr.bf16.mxu0 %v547
        %607 = vmatpush1.bf16.msra.mxu0 %v546
        %608 = vmatprep.subr.bf16.mxu0 %v551
        %609 = vmatpush1.bf16.msra.mxu0 %v550
        %610 = vmatprep.subr.bf16.mxu0 %v555
        %611 = vmatpush1.bf16.msra.mxu0 %v554
        %612 = vmatprep.subr.bf16.mxu0 %v559
        %613 = vmatpush1.bf16.msra.mxu0 %v558
        %614 = vmatprep.subr.bf16.mxu0 %v563
        %615 = vmatpush1.bf16.msra.mxu0 %v562
        %616 = vmatprep.subr.bf16.mxu0 %v567
        %617 = vmatpush1.bf16.msra.mxu0 %v566
        %618 = vmatprep.subr.bf16.mxu0 0
        %619 = vmatpush1.bf16.msra.mxu0 0
        %620 = vmatprep.subr.bf16.mxu0 0
        %621 = vmatpush1.bf16.msra.mxu0 0
        %622 = vmatprep.subr.bf16.mxu0 0
        %623 = vmatpush1.bf16.msra.mxu0 0
        %624 = vmatprep.subr.bf16.mxu0 0
        %625 = vmatpush1.bf16.msra.mxu0 0
        %626 = vmatprep.subr.bf16.mxu0 0
        %627 = vmatpush1.bf16.msra.mxu0 0
        %628 = vmatprep.subr.bf16.mxu0 0
        %629 = vmatpush1.bf16.msra.mxu0 0
        %630 = vmatprep.subr.bf16.mxu0 0
        %631 = vmatpush1.bf16.msra.mxu0 0
        %632 = vmatprep.subr.bf16.mxu0 0
        %633 = vmatpush1.bf16.msra.mxu0 0
        %634 = vmatprep.mubr.bf16.mxu0 0
        %635 = vmatmul.mubr.bf16.gmra.mrb[0].mxu0 %v434
        %v636 = vpop.f32.mrb[0].mxu0
        %v637 = vadd.f32 0.0, %v636
        %v638 = vpop.f32.mrb[0].mxu0
        %v639 = vadd.f32 0.0, %v638
        %v640 = vpop.f32.mrb[0].mxu0
        %v641 = vadd.f32 0.0, %v640
        %v642 = vpop.f32.mrb[0].mxu0
        %v643 = vadd.f32 0.0, %v642
        %644 = vmatprep.mubr.bf16.mxu0 0
        %645 = vmatmul.mubr.bf16.gmra.mrb[0].mxu0 %v435
        %v646 = vpop.f32.mrb[0].mxu0
        %v647 = vadd.f32 0.0, %v646
        %v648 = vpop.f32.mrb[0].mxu0
        %v649 = vadd.f32 0.0, %v648
        %v650 = vpop.f32.mrb[0].mxu0
        %v651 = vadd.f32 0.0, %v650
        %v652 = vpop.f32.mrb[0].mxu0
        %v653 = vadd.f32 0.0, %v652
        %654 = vmatprep.mubr.bf16.mxu0 0
        %655 = vmatmul.mubr.bf16.gmra.mrb[0].mxu0 %v436
        %v656 = vpop.f32.mrb[0].mxu0
        %v657 = vadd.f32 0.0, %v656
        %v658 = vpop.f32.mrb[0].mxu0
        %v659 = vadd.f32 0.0, %v658
        %v660 = vpop.f32.mrb[0].mxu0
        %v661 = vadd.f32 0.0, %v660
        %v662 = vpop.f32.mrb[0].mxu0
        %v663 = vadd.f32 0.0, %v662
        %664 = vmatprep.mubr.bf16.mxu0 0
        %665 = vmatmul.mubr.bf16.gmra.mrb[0].mxu0 %v437
        %v666 = vpop.f32.mrb[0].mxu0
        %v667 = vadd.f32 0.0, %v666
        %v668 = vpop.f32.mrb[0].mxu0
        %v669 = vadd.f32 0.0, %v668
        %v670 = vpop.f32.mrb[0].mxu0
        %v671 = vadd.f32 0.0, %v670
        %v672 = vpop.f32.mrb[0].mxu0
        %v673 = vadd.f32 0.0, %v672
        %674 = vdwg.mxu0
        %675 = vmatprep.subr.bf16.mxu0 %v541
        %676 = vmatpush1.bf16.msra.mxu0 %v540
        %677 = vmatprep.subr.bf16.mxu0 %v545
        %678 = vmatpush1.bf16.msra.mxu0 %v544
        %679 = vmatprep.subr.bf16.mxu0 %v549
        %680 = vmatpush1.bf16.msra.mxu0 %v548
        %681 = vmatprep.subr.bf16.mxu0 %v553
        %682 = vmatpush1.bf16.msra.mxu0 %v552
        %683 = vmatprep.subr.bf16.mxu0 %v557
        %684 = vmatpush1.bf16.msra.mxu0 %v556
        %685 = vmatprep.subr.bf16.mxu0 %v561
        %686 = vmatpush1.bf16.msra.mxu0 %v560
        %687 = vmatprep.subr.bf16.mxu0 %v565
        %688 = vmatpush1.bf16.msra.mxu0 %v564
        %689 = vmatprep.subr.bf16.mxu0 %v569
        %690 = vmatpush1.bf16.msra.mxu0 %v568
        %691 = vmatprep.subr.bf16.mxu0 0
        %692 = vmatpush1.bf16.msra.mxu0 0
        %693 = vmatprep.subr.bf16.mxu0 0
        %694 = vmatpush1.bf16.msra.mxu0 0
        %695 = vmatprep.subr.bf16.mxu0 0
        %696 = vmatpush1.bf16.msra.mxu0 0
        %697 = vmatprep.subr.bf16.mxu0 0
        %698 = vmatpush1.bf16.msra.mxu0 0
        %699 = vmatprep.subr.bf16.mxu0 0
        %700 = vmatpush1.bf16.msra.mxu0 0
        %701 = vmatprep.subr.bf16.mxu0 0
        %702 = vmatpush1.bf16.msra.mxu0 0
        %703 = vmatprep.subr.bf16.mxu0 0
        %704 = vmatpush1.bf16.msra.mxu0 0
        %705 = vmatprep.subr.bf16.mxu0 0
        %706 = vmatpush1.bf16.msra.mxu0 0
        %707 = vmatprep.mubr.bf16.mxu0 0
        %708 = vmatmul.mubr.bf16.gmra.mrb[0].mxu0 %v434
        %v709 = vpop.f32.mrb[0].mxu0
        %v710 = vadd.f32 0.0, %v709
        %v711 = vpop.f32.mrb[0].mxu0
        %v712 = vadd.f32 0.0, %v711
        %v713 = vpop.f32.mrb[0].mxu0
        %v714 = vadd.f32 0.0, %v713
        %v715 = vpop.f32.mrb[0].mxu0
        %v716 = vadd.f32 0.0, %v715
        %717 = vmatprep.mubr.bf16.mxu0 0
        %718 = vmatmul.mubr.bf16.gmra.mrb[0].mxu0 %v435
        %v719 = vpop.f32.mrb[0].mxu0
        %v720 = vadd.f32 0.0, %v719
        %v721 = vpop.f32.mrb[0].mxu0
        %v722 = vadd.f32 0.0, %v721
        %v723 = vpop.f32.mrb[0].mxu0
        %v724 = vadd.f32 0.0, %v723
        %v725 = vpop.f32.mrb[0].mxu0
        %v726 = vadd.f32 0.0, %v725
        %727 = vmatprep.mubr.bf16.mxu0 0
        %728 = vmatmul.mubr.bf16.gmra.mrb[0].mxu0 %v436
        %v729 = vpop.f32.mrb[0].mxu0
        %v730 = vadd.f32 0.0, %v729
        %v731 = vpop.f32.mrb[0].mxu0
        %v732 = vadd.f32 0.0, %v731
        %v733 = vpop.f32.mrb[0].mxu0
        %v734 = vadd.f32 0.0, %v733
        %v735 = vpop.f32.mrb[0].mxu0
        %v736 = vadd.f32 0.0, %v735
        %737 = vmatprep.mubr.bf16.mxu0 0
        %738 = vmatmul.mubr.bf16.gmra.mrb[0].mxu0 %v437
        %v739 = vpop.f32.mrb[0].mxu0
        %v740 = vadd.f32 0.0, %v739
        %v741 = vpop.f32.mrb[0].mxu0
        %v742 = vadd.f32 0.0, %v741
        %v743 = vpop.f32.mrb[0].mxu0
        %v744 = vadd.f32 0.0, %v743
        %v745 = vpop.f32.mrb[0].mxu0
        %v746 = vadd.f32 0.0, %v745
        %747 = vdwg.mxu0
        %v756 = vunpack.c.l.b16 %v338
        %v757 = vunpack.c.l.b16 %v339
        %v758 = vunpack.c.l.b16 %v340
        %v759 = vunpack.c.l.b16 %v341
        %v760 = vunpack.c.l.b16 %v342
        %v761 = vunpack.c.l.b16 %v343
        %v762 = vunpack.c.l.b16 %v344
        %v763 = vunpack.c.l.b16 %v345
        %v764 = vpack.c.b16 %v757, %v756
        %v765 = vpack.c.b16 %v759, %v758
        %v766 = vpack.c.b16 %v761, %v760
        %v767 = vpack.c.b16 %v763, %v762
        %v804 = vunpack.c.l.b16 %v346
        %v805 = vunpack.c.h.b16 %v346
        %v806 = vunpack.c.l.b16 %v347
        %v807 = vunpack.c.h.b16 %v347
        %v808 = vunpack.c.l.b16 %v348
        %v809 = vunpack.c.h.b16 %v348
        %v810 = vunpack.c.l.b16 %v349
        %v811 = vunpack.c.h.b16 %v349
        %v812 = vunpack.c.l.b16 %v350
        %v813 = vunpack.c.h.b16 %v350
        %v814 = vunpack.c.l.b16 %v351
        %v815 = vunpack.c.h.b16 %v351
        %v816 = vunpack.c.l.b16 %v352
        %v817 = vunpack.c.h.b16 %v352
        %v818 = vunpack.c.l.b16 %v353
        %v819 = vunpack.c.h.b16 %v353
        %v820 = vunpack.c.l.b16 %v354
        %v821 = vunpack.c.h.b16 %v354
        %v822 = vunpack.c.l.b16 %v355
        %v823 = vunpack.c.h.b16 %v355
        %v824 = vunpack.c.l.b16 %v356
        %v825 = vunpack.c.h.b16 %v356
        %v826 = vunpack.c.l.b16 %v357
        %v827 = vunpack.c.h.b16 %v357
        %v828 = vunpack.c.l.b16 %v358
        %v829 = vunpack.c.h.b16 %v358
        %v830 = vunpack.c.l.b16 %v359
        %v831 = vunpack.c.h.b16 %v359
        %v832 = vunpack.c.l.b16 %v360
        %v833 = vunpack.c.h.b16 %v360
        %v834 = vunpack.c.l.b16 %v361
        %v835 = vunpack.c.h.b16 %v361
        %v836 = vunpack.c.l.b16 %v362
        %v837 = vunpack.c.h.b16 %v362
        %v838 = vunpack.c.l.b16 %v363
        %v839 = vunpack.c.h.b16 %v363
        %v840 = vunpack.c.l.b16 %v364
        %v841 = vunpack.c.h.b16 %v364
        %v842 = vunpack.c.l.b16 %v365
        %v843 = vunpack.c.h.b16 %v365
        %v844 = vunpack.c.l.b16 %v366
        %v845 = vunpack.c.h.b16 %v366
        %v846 = vunpack.c.l.b16 %v367
        %v847 = vunpack.c.h.b16 %v367
        %v848 = vunpack.c.l.b16 %v368
        %v849 = vunpack.c.h.b16 %v368
        %v850 = vunpack.c.l.b16 %v369
        %v851 = vunpack.c.h.b16 %v369
        %v852 = vunpack.c.l.b16 %v370
        %v853 = vunpack.c.h.b16 %v370
        %v854 = vunpack.c.l.b16 %v371
        %v855 = vunpack.c.h.b16 %v371
        %v856 = vunpack.c.l.b16 %v372
        %v857 = vunpack.c.h.b16 %v372
        %v858 = vunpack.c.l.b16 %v373
        %v859 = vunpack.c.h.b16 %v373
        %v860 = vunpack.c.l.b16 %v374
        %v861 = vunpack.c.h.b16 %v374
        %v862 = vunpack.c.l.b16 %v375
        %v863 = vunpack.c.h.b16 %v375
        %v864 = vunpack.c.l.b16 %v376
        %v865 = vunpack.c.h.b16 %v376
        %v866 = vunpack.c.l.b16 %v377
        %v867 = vunpack.c.h.b16 %v377
        %v868 = vpack.c.b16 %v808, %v804
        %v869 = vpack.c.b16 %v809, %v805
        %v870 = vpack.c.b16 %v810, %v806
        %v871 = vpack.c.b16 %v811, %v807
        %v872 = vpack.c.b16 %v816, %v812
        %v873 = vpack.c.b16 %v817, %v813
        %v874 = vpack.c.b16 %v818, %v814
        %v875 = vpack.c.b16 %v819, %v815
        %v876 = vpack.c.b16 %v824, %v820
        %v877 = vpack.c.b16 %v825, %v821
        %v878 = vpack.c.b16 %v826, %v822
        %v879 = vpack.c.b16 %v827, %v823
        %v880 = vpack.c.b16 %v832, %v828
        %v881 = vpack.c.b16 %v833, %v829
        %v882 = vpack.c.b16 %v834, %v830
        %v883 = vpack.c.b16 %v835, %v831
        %v884 = vpack.c.b16 %v840, %v836
        %v885 = vpack.c.b16 %v841, %v837
        %v886 = vpack.c.b16 %v842, %v838
        %v887 = vpack.c.b16 %v843, %v839
        %v888 = vpack.c.b16 %v848, %v844
        %v889 = vpack.c.b16 %v849, %v845
        %v890 = vpack.c.b16 %v850, %v846
        %v891 = vpack.c.b16 %v851, %v847
        %v892 = vpack.c.b16 %v856, %v852
        %v893 = vpack.c.b16 %v857, %v853
        %v894 = vpack.c.b16 %v858, %v854
        %v895 = vpack.c.b16 %v859, %v855
        %v896 = vpack.c.b16 %v864, %v860
        %v897 = vpack.c.b16 %v865, %v861
        %v898 = vpack.c.b16 %v866, %v862
        %v899 = vpack.c.b16 %v867, %v863
        %932 = vmatprep.subr.bf16.mxu0 %v869
        %933 = vmatpush1.bf16.msra.mxu0 %v868
        %934 = vmatprep.subr.bf16.mxu0 %v873
        %935 = vmatpush1.bf16.msra.mxu0 %v872
        %936 = vmatprep.subr.bf16.mxu0 %v877
        %937 = vmatpush1.bf16.msra.mxu0 %v876
        %938 = vmatprep.subr.bf16.mxu0 %v881
        %939 = vmatpush1.bf16.msra.mxu0 %v880
        %940 = vmatprep.subr.bf16.mxu0 %v885
        %941 = vmatpush1.bf16.msra.mxu0 %v884
        %942 = vmatprep.subr.bf16.mxu0 %v889
        %943 = vmatpush1.bf16.msra.mxu0 %v888
        %944 = vmatprep.subr.bf16.mxu0 %v893
        %945 = vmatpush1.bf16.msra.mxu0 %v892
        %946 = vmatprep.subr.bf16.mxu0 %v897
        %947 = vmatpush1.bf16.msra.mxu0 %v896
        %948 = vmatprep.subr.bf16.mxu0 0
        %949 = vmatpush1.bf16.msra.mxu0 0
        %950 = vmatprep.subr.bf16.mxu0 0
        %951 = vmatpush1.bf16.msra.mxu0 0
        %952 = vmatprep.subr.bf16.mxu0 0
        %953 = vmatpush1.bf16.msra.mxu0 0
        %954 = vmatprep.subr.bf16.mxu0 0
        %955 = vmatpush1.bf16.msra.mxu0 0
        %956 = vmatprep.subr.bf16.mxu0 0
        %957 = vmatpush1.bf16.msra.mxu0 0
        %958 = vmatprep.subr.bf16.mxu0 0
        %959 = vmatpush1.bf16.msra.mxu0 0
        %960 = vmatprep.subr.bf16.mxu0 0
        %961 = vmatpush1.bf16.msra.mxu0 0
        %962 = vmatprep.subr.bf16.mxu0 0
        %963 = vmatpush1.bf16.msra.mxu0 0
        %964 = vmatprep.mubr.bf16.mxu0 0
        %965 = vmatmul.mubr.bf16.gmra.mrb[0].mxu0 %v764
        %v966 = vpop.f32.mrb[0].mxu0
        %v967 = vadd.f32 %v637, %v966
        %v968 = vpop.f32.mrb[0].mxu0
        %v969 = vadd.f32 %v639, %v968
        %v970 = vpop.f32.mrb[0].mxu0
        %v971 = vadd.f32 %v641, %v970
        %v972 = vpop.f32.mrb[0].mxu0
        %v973 = vadd.f32 %v643, %v972
        %974 = vmatprep.mubr.bf16.mxu0 0
        %975 = vmatmul.mubr.bf16.gmra.mrb[0].mxu0 %v765
        %v976 = vpop.f32.mrb[0].mxu0
        %v977 = vadd.f32 %v647, %v976
        %v978 = vpop.f32.mrb[0].mxu0
        %v979 = vadd.f32 %v649, %v978
        %v980 = vpop.f32.mrb[0].mxu0
        %v981 = vadd.f32 %v651, %v980
        %v982 = vpop.f32.mrb[0].mxu0
        %v983 = vadd.f32 %v653, %v982
        %984 = vmatprep.mubr.bf16.mxu0 0
        %985 = vmatmul.mubr.bf16.gmra.mrb[0].mxu0 %v766
        %v986 = vpop.f32.mrb[0].mxu0
        %v987 = vadd.f32 %v657, %v986
        %v988 = vpop.f32.mrb[0].mxu0
        %v989 = vadd.f32 %v659, %v988
        %v990 = vpop.f32.mrb[0].mxu0
        %v991 = vadd.f32 %v661, %v990
        %v992 = vpop.f32.mrb[0].mxu0
        %v993 = vadd.f32 %v663, %v992
        %994 = vmatprep.mubr.bf16.mxu0 0
        %995 = vmatmul.mubr.bf16.gmra.mrb[0].mxu0 %v767
        %v996 = vpop.f32.mrb[0].mxu0
        %v997 = vadd.f32 %v667, %v996
        %v998 = vpop.f32.mrb[0].mxu0
        %v999 = vadd.f32 %v669, %v998
        %v1000 = vpop.f32.mrb[0].mxu0
        %v1001 = vadd.f32 %v671, %v1000
        %v1002 = vpop.f32.mrb[0].mxu0
        %v1003 = vadd.f32 %v673, %v1002
        %1004 = vdwg.mxu0
        %1005 = vmatprep.subr.bf16.mxu0 %v871
        %1006 = vmatpush1.bf16.msra.mxu0 %v870
        %1007 = vmatprep.subr.bf16.mxu0 %v875
        %1008 = vmatpush1.bf16.msra.mxu0 %v874
        %1009 = vmatprep.subr.bf16.mxu0 %v879
        %1010 = vmatpush1.bf16.msra.mxu0 %v878
        %1011 = vmatprep.subr.bf16.mxu0 %v883
        %1012 = vmatpush1.bf16.msra.mxu0 %v882
        %1013 = vmatprep.subr.bf16.mxu0 %v887
        %1014 = vmatpush1.bf16.msra.mxu0 %v886
        %1015 = vmatprep.subr.bf16.mxu0 %v891
        %1016 = vmatpush1.bf16.msra.mxu0 %v890
        %1017 = vmatprep.subr.bf16.mxu0 %v895
        %1018 = vmatpush1.bf16.msra.mxu0 %v894
        %1019 = vmatprep.subr.bf16.mxu0 %v899
        %1020 = vmatpush1.bf16.msra.mxu0 %v898
        %1021 = vmatprep.subr.bf16.mxu0 0
        %1022 = vmatpush1.bf16.msra.mxu0 0
        %1023 = vmatprep.subr.bf16.mxu0 0
        %1024 = vmatpush1.bf16.msra.mxu0 0
        %1025 = vmatprep.subr.bf16.mxu0 0
        %1026 = vmatpush1.bf16.msra.mxu0 0
        %1027 = vmatprep.subr.bf16.mxu0 0
        %1028 = vmatpush1.bf16.msra.mxu0 0
        %1029 = vmatprep.subr.bf16.mxu0 0
        %1030 = vmatpush1.bf16.msra.mxu0 0
        %1031 = vmatprep.subr.bf16.mxu0 0
        %1032 = vmatpush1.bf16.msra.mxu0 0
        %1033 = vmatprep.subr.bf16.mxu0 0
        %1034 = vmatpush1.bf16.msra.mxu0 0
        %1035 = vmatprep.subr.bf16.mxu0 0
        %1036 = vmatpush1.bf16.msra.mxu0 0
        %1037 = vmatprep.mubr.bf16.mxu0 0
        %1038 = vmatmul.mubr.bf16.gmra.mrb[0].mxu0 %v764
        %v1039 = vpop.f32.mrb[0].mxu0
        %v1040 = vadd.f32 %v710, %v1039
        %v1041 = vpop.f32.mrb[0].mxu0
        %v1042 = vadd.f32 %v712, %v1041
        %v1043 = vpop.f32.mrb[0].mxu0
        %v1044 = vadd.f32 %v714, %v1043
        %v1045 = vpop.f32.mrb[0].mxu0
        %v1046 = vadd.f32 %v716, %v1045
        %1047 = vmatprep.mubr.bf16.mxu0 0
        %1048 = vmatmul.mubr.bf16.gmra.mrb[0].mxu0 %v765
        %v1049 = vpop.f32.mrb[0].mxu0
        %v1050 = vadd.f32 %v720, %v1049
        %v1051 = vpop.f32.mrb[0].mxu0
        %v1052 = vadd.f32 %v722, %v1051
        %v1053 = vpop.f32.mrb[0].mxu0
        %v1054 = vadd.f32 %v724, %v1053
        %v1055 = vpop.f32.mrb[0].mxu0
        %v1056 = vadd.f32 %v726, %v1055
        %1057 = vmatprep.mubr.bf16.mxu0 0
        %1058 = vmatmul.mubr.bf16.gmra.mrb[0].mxu0 %v766
        %v1059 = vpop.f32.mrb[0].mxu0
        %v1060 = vadd.f32 %v730, %v1059
        %v1061 = vpop.f32.mrb[0].mxu0
        %v1062 = vadd.f32 %v732, %v1061
        %v1063 = vpop.f32.mrb[0].mxu0
        %v1064 = vadd.f32 %v734, %v1063
        %v1065 = vpop.f32.mrb[0].mxu0
        %v1066 = vadd.f32 %v736, %v1065
        %1067 = vmatprep.mubr.bf16.mxu0 0
        %1068 = vmatmul.mubr.bf16.gmra.mrb[0].mxu0 %v767
        %v1069 = vpop.f32.mrb[0].mxu0
        %v1070 = vadd.f32 %v740, %v1069
        %v1071 = vpop.f32.mrb[0].mxu0
        %v1072 = vadd.f32 %v742, %v1071
        %v1073 = vpop.f32.mrb[0].mxu0
        %v1074 = vadd.f32 %v744, %v1073
        %v1075 = vpop.f32.mrb[0].mxu0
        %v1076 = vadd.f32 %v746, %v1075
        %1077 = vdwg.mxu0
        %v1078 = vld [vmem:[%s4] sm:$0xf]
        %v1080 = vlaneseq
        %v1081 = vshrl.u32 %v1080, 7
        %v1082 = vsub.s32 0, %v1081
        %v1083 = vrot.slane %v1078, %v1082
        %v1084 = vlaneseq
        %v1085 = vshrl.u32 %v1084, 7
        %v1086 = vsub.s32 1, %v1085
        %v1087 = vrot.slane %v1078, %v1086
        %v1088 = vlaneseq
        %v1089 = vshrl.u32 %v1088, 7
        %v1090 = vsub.s32 2, %v1089
        %v1091 = vrot.slane %v1078, %v1090
        %v1092 = vlaneseq
        %v1093 = vshrl.u32 %v1092, 7
        %v1094 = vsub.s32 3, %v1093
        %v1095 = vrot.slane %v1078, %v1094
        %v1100 = vadd.f32 %v967, %v1083
        %v1101 = vadd.f32 %v969, %v1087
        %v1102 = vadd.f32 %v1040, %v1091
        %v1103 = vadd.f32 %v1042, %v1095
        %v1104 = vadd.f32 %v971, %v1083
        %v1105 = vadd.f32 %v973, %v1087
        %v1106 = vadd.f32 %v1044, %v1091
        %v1107 = vadd.f32 %v1046, %v1095
        %v1108 = vadd.f32 %v977, %v1083
        %v1109 = vadd.f32 %v979, %v1087
        %v1110 = vadd.f32 %v1050, %v1091
        %v1111 = vadd.f32 %v1052, %v1095
        %v1112 = vadd.f32 %v981, %v1083
        %v1113 = vadd.f32 %v983, %v1087
        %v1114 = vadd.f32 %v1054, %v1091
        %v1115 = vadd.f32 %v1056, %v1095
        %v1116 = vadd.f32 %v987, %v1083
        %v1117 = vadd.f32 %v989, %v1087
        %v1118 = vadd.f32 %v1060, %v1091
        %v1119 = vadd.f32 %v1062, %v1095
        %v1120 = vadd.f32 %v991, %v1083
        %v1121 = vadd.f32 %v993, %v1087
        %v1122 = vadd.f32 %v1064, %v1091
        %v1123 = vadd.f32 %v1066, %v1095
        %v1124 = vadd.f32 %v997, %v1083
        %v1125 = vadd.f32 %v999, %v1087
        %v1126 = vadd.f32 %v1070, %v1091
        %v1127 = vadd.f32 %v1072, %v1095
        %v1128 = vadd.f32 %v1001, %v1083
        %v1129 = vadd.f32 %v1003, %v1087
        %v1130 = vadd.f32 %v1074, %v1091
        %v1131 = vadd.f32 %v1076, %v1095
        %v1132 = vpack.c.bf16 %v1104, %v1100
        %v1133 = vpack.c.bf16 %v1105, %v1101
        %v1134 = vpack.c.bf16 %v1106, %v1102
        %v1135 = vpack.c.bf16 %v1107, %v1103
        %v1136 = vpack.c.bf16 %v1112, %v1108
        %v1137 = vpack.c.bf16 %v1113, %v1109
        %v1138 = vpack.c.bf16 %v1114, %v1110
        %v1139 = vpack.c.bf16 %v1115, %v1111
        %v1140 = vpack.c.bf16 %v1120, %v1116
        %v1141 = vpack.c.bf16 %v1121, %v1117
        %v1142 = vpack.c.bf16 %v1122, %v1118
        %v1143 = vpack.c.bf16 %v1123, %v1119
        %v1144 = vpack.c.bf16 %v1128, %v1124
        %v1145 = vpack.c.bf16 %v1129, %v1125
        %v1146 = vpack.c.bf16 %v1130, %v1126
        %v1147 = vpack.c.bf16 %v1131, %v1127
        %v1156 = vunpack.c.l.b16 %v1132
        %v1157 = vunpack.c.l.b16 %v1133
        %v1158 = vunpack.c.h.b16 %v1132
        %v1159 = vunpack.c.h.b16 %v1133
        %v1160 = vunpack.c.l.b16 %v1136
        %v1161 = vunpack.c.l.b16 %v1137
        %v1162 = vunpack.c.h.b16 %v1136
        %v1163 = vunpack.c.h.b16 %v1137
        %v1164 = vunpack.c.l.b16 %v1140
        %v1165 = vunpack.c.l.b16 %v1141
        %v1166 = vunpack.c.h.b16 %v1140
        %v1167 = vunpack.c.h.b16 %v1141
        %v1168 = vunpack.c.l.b16 %v1144
        %v1169 = vunpack.c.l.b16 %v1145
        %v1170 = vunpack.c.h.b16 %v1144
        %v1171 = vunpack.c.h.b16 %v1145
        %v1172 = vpack.c.b16 %v1157, %v1156
        %v1173 = vpack.c.b16 %v1159, %v1158
        %v1174 = vpack.c.b16 %v1161, %v1160
        %v1175 = vpack.c.b16 %v1163, %v1162
        %v1176 = vpack.c.b16 %v1165, %v1164
        %v1177 = vpack.c.b16 %v1167, %v1166
        %v1178 = vpack.c.b16 %v1169, %v1168
        %v1179 = vpack.c.b16 %v1171, %v1170
        %1188 = vst [vmem:[%s333] sm:$0xff] %v1172
        %1189 = vst [vmem:[%s333 + $0x10] sm:$0xff] %v1173
        %1190 = vst [vmem:[%s333 + $0x20] sm:$0xff] %v1174
        %1191 = vst [vmem:[%s333 + $0x30] sm:$0xff] %v1175
        %1192 = vst [vmem:[%s333 + $0x40] sm:$0xff] %v1176
        %1193 = vst [vmem:[%s333 + $0x50] sm:$0xff] %v1177
        %1194 = vst [vmem:[%s333 + $0x60] sm:$0xff] %v1178
        %1195 = vst [vmem:[%s333 + $0x70] sm:$0xff] %v1179
        %v1204 = vunpack.c.l.b16 %v1134
        %v1205 = vunpack.c.l.b16 %v1135
        %v1206 = vunpack.c.h.b16 %v1134
        %v1207 = vunpack.c.h.b16 %v1135
        %v1208 = vunpack.c.l.b16 %v1138
        %v1209 = vunpack.c.l.b16 %v1139
        %v1210 = vunpack.c.h.b16 %v1138
        %v1211 = vunpack.c.h.b16 %v1139
        %v1212 = vunpack.c.l.b16 %v1142
        %v1213 = vunpack.c.l.b16 %v1143
        %v1214 = vunpack.c.h.b16 %v1142
        %v1215 = vunpack.c.h.b16 %v1143
        %v1216 = vunpack.c.l.b16 %v1146
        %v1217 = vunpack.c.l.b16 %v1147
        %v1218 = vunpack.c.h.b16 %v1146
        %v1219 = vunpack.c.h.b16 %v1147
        %v1220 = vpack.c.b16 %v1205, %v1204
        %v1221 = vpack.c.b16 %v1207, %v1206
        %v1222 = vpack.c.b16 %v1209, %v1208
        %v1223 = vpack.c.b16 %v1211, %v1210
        %v1224 = vpack.c.b16 %v1213, %v1212
        %v1225 = vpack.c.b16 %v1215, %v1214
        %v1226 = vpack.c.b16 %v1217, %v1216
        %v1227 = vpack.c.b16 %v1219, %v1218
        %s1236 = scalar_lea.vmem %s333, 8 [#allocation10]
        %1237 = vst [vmem:[%s1236] sm:$0xff] %v1220
        %1238 = vst [vmem:[%s1236 + $0x10] sm:$0xff] %v1221
        %1239 = vst [vmem:[%s1236 + $0x20] sm:$0xff] %v1222
        %1240 = vst [vmem:[%s1236 + $0x30] sm:$0xff] %v1223
        %1241 = vst [vmem:[%s1236 + $0x40] sm:$0xff] %v1224
        %1242 = vst [vmem:[%s1236 + $0x50] sm:$0xff] %v1225
        %1243 = vst [vmem:[%s1236 + $0x60] sm:$0xff] %v1226
        %1244 = vst [vmem:[%s1236 + $0x70] sm:$0xff] %v1227
        %s1245 = sand.u32 %s167, 1
        %s1246 = scalar_lea.sflag [#allocation4], %s1245
        %s1247 = sand.u32 %s167, 1
        %s1248 = smul.addr %s1247, 128
        %s1249 = scalar_lea.vmem [#allocation10], %s1248
        // Predicated region
        $region57: #{tpu_custom_call.1} parent=39 // pred_check
          %p1250 = pneg %p177
        $region58: #{tpu_custom_call.1} parent=39 // pred_check_branch
          %1252 = sbr.rel (%p1250) target = $region60
        $region59: #{tpu_custom_call.1} parent=39 // pred_region
          %s1253 = smul.u32 8, %s31
          %s1255 = ssub.s32 2048, 2048
          %1256 = vsyncadd %s1246, %s1255
          %s1257 = smul.addr %s1253, 4
          %s1258 = smul.addr %s30, 32
          %s1259 = sadd.s32 %s1257, %s1258
          %s1260 = smul.addr %s1259, 64
          %s1261 = scalar_lea.hbm %s5, %s1260
          %s1262 = sshll.u32 %s1249, 4
          %s1263 = int_to_ptr.vmem [resolvable:$true] %s1262
          %1268 = dma.vmem_to_hbm [thread:$0]  %s1263, 2048, %s1261, %s1246, 128, 128, 8
        $region60: #{tpu_custom_call.1} parent=39 // pred_fallthru
          _
      $region40: #{tpu_custom_call.1} parent=5 // pred_fallthru
        _
      %p1269 = scmp.le.s32.totalorder 2, %s21
      // Predicated region
      $region61: #{tpu_custom_call.1} parent=5 // pred_check
        %p1270 = pneg %p1269
      $region62: #{tpu_custom_call.1} parent=5 // pred_check_branch
        %1272 = sbr.rel (%p1270) target = $region64
      $region63: #{tpu_custom_call.1} parent=5 // pred_region
        %s1273 = ssub.s32 %s21, 2
        // Predicated region
        $region65: #{tpu_custom_call.1} parent=63 // pred_check
          %p1274 = pneg %p183
        $region66: #{tpu_custom_call.1} parent=63 // pred_check_branch
          %1276 = sbr.rel (%p1274) target = $region68
        $region67: #{tpu_custom_call.1} parent=63 // pred_region
          %s1277 = sand.u32 %s168, 1
          %s1278 = scalar_lea.sflag [#allocation4], %s1277
          %s1279 = sand.u32 %s168, 1
          %s1280 = smul.addr %s1279, 128
          %s1281 = scalar_lea.vmem [#allocation10], %s1280
          %1282 = dma.done %s1278, 2048
        $region68: #{tpu_custom_call.1} parent=63 // pred_fallthru
          _
      $region64: #{tpu_custom_call.1} parent=5 // pred_fallthru
        _
    $region6: #{tpu_custom_call.1} parent=1 // loop_footer
      %s25 = sadd.s32 1, %s21
    $region7: #{tpu_custom_call.1} parent=1 // loop_footer_branch
      %20 = sbr.rel target = $region3
    $region8: #{tpu_custom_call.1} parent=1 // loop_exit
      _
    %1283 = vsyncpa [#allocation3], 1
    %s1284 = scalar_lea.sflag [#allocation3], 1
    %1285 = vsyncpa %s1284, 1
    %1286 = vsyncpa [#allocation6], 1
    %s1287 = scalar_lea.sflag [#allocation6], 1
    %1288 = vsyncpa %s1287, 1
    %1289 = vsyncpa [#allocation9], 1
    %1290 = vsyncpa [#allocation4], 1
    %s1291 = scalar_lea.sflag [#allocation4], 1
    %1292 = vsyncpa %s1291, 1

</llo_original>
